<compile_context>
chip_gen: v6e
topology: v6e:2x2x1
jax: 0.10.0
libtpu: 0.0.40
codegen_flags: <defaults>
</compile_context>

<pallas_src>
import functools

import jax
import jax.numpy as jnp
from jax.experimental import pallas as pl
from jax.experimental.pallas import tpu as pltpu


def _ce_kernel(logits_ref, targets_ref, out_ref, *, total_n, tile_n, needs_mask):
    # Blocks are (tile_n, C); class dim sits on the lane axis.
    logits = logits_ref[...].astype(jnp.float32)
    targets = targets_ref[...].astype(jnp.float32)

    # Row-wise numerically-stable log-softmax.
    m = jnp.max(logits, axis=-1, keepdims=True)              # XLU reduce
    shifted = logits - m
    lse = jnp.log(jnp.sum(jnp.exp(shifted), axis=-1, keepdims=True))  # EUP + XLU
    log_probs = shifted - lse

    contrib = targets * log_probs                            # (tile_n, C), VPU

    if needs_mask:
        # Last tile may run past N: zero padded rows so they don't contribute
        # (the wrapper divides by the true N). where() discards any NaN/Inf
        # coming from the padded garbage rows.
        i = pl.program_id(0)
        row = i * tile_n + jax.lax.broadcasted_iota(jnp.int32, (tile_n, 1), 0)
        contrib = jnp.where(row < total_n, contrib, 0.0)

    # Per-tile partial sums reduced over the batch (sublane) axis only.
    # Lane-dense (1, C) slab per tile; final reduce + mean done in the wrapper
    # so every grid step is independent ("parallel" => megacore-friendly).
    out_ref[...] = -jnp.sum(contrib, axis=0, keepdims=True)  # (1, C)


def _choose_tile_n(n, c, pred_dtype, tgt_dtype, *, input_vmem_budget_bytes, max_tile_n):
    """Largest batch tile whose double-buffered inputs fit the VMEM budget."""
    bytes_per_row = c * (jnp.dtype(pred_dtype).itemsize + jnp.dtype(tgt_dtype).itemsize)
    # Factor 2: Pallas double-buffers each pipelined input.
    max_rows = max(8, int(input_vmem_budget_bytes // (2 * bytes_per_row)))
    tile = min(max_tile_n, max_rows)
    if n <= tile:
        return n  # single block; block dim == full array dim is always legal
    return max(8, (tile // 8) * 8)


def cross_entropy(
    prediction: jax.Array,
    target: jax.Array,
    *,
    tile_n: int | None = None,
    # Sized so (2 inputs x 2 buffers) stays well inside v7x's 64 MiB physical
    # VMEM per TensorCore while also being generous on v5e/v6e (128 MiB).
    input_vmem_budget_bytes: int = 24 * 1024 * 1024,
    max_tile_n: int = 2048,
) -> jax.Array:
    """CrossEntropyLoss (mean reduction, probability targets) via Pallas.

    prediction: [N, C] logits (float)
    target:     [N, C] class probabilities
    returns scalar float32 loss.
    """
    # Matches the torch module's `target.to(dtype=prediction.dtype)`, but only
    # materializes a cast (an extra HBM pass) when dtypes actually differ.
    if target.dtype != prediction.dtype:
        target = target.astype(prediction.dtype)

    n, c = prediction.shape

    if tile_n is None:
        tile_n = _choose_tile_n(
            n, c, prediction.dtype, target.dtype,
            input_vmem_budget_bytes=input_vmem_budget_bytes,
            max_tile_n=max_tile_n,
        )
    else:
        tile_n = min(tile_n, n)
        if tile_n < n:
            tile_n = max(8, (tile_n // 8) * 8)

    grid_n = pl.cdiv(n, tile_n)
    needs_mask = (n % tile_n) != 0

    kernel = functools.partial(
        _ce_kernel, total_n=n, tile_n=tile_n, needs_mask=needs_mask
    )

    partials = pl.pallas_call(
        kernel,
        out_shape=jax.ShapeDtypeStruct((grid_n, c), jnp.float32),
        grid_spec=pltpu.PrefetchScalarGridSpec(
            num_scalar_prefetch=0,
            grid=(grid_n,),
            in_specs=[
                pl.BlockSpec((tile_n, c), lambda i: (i, 0)),
                pl.BlockSpec((tile_n, c), lambda i: (i, 0)),
            ],
            out_specs=pl.BlockSpec((1, c), lambda i: (i, 0)),
        ),
        compiler_params=pltpu.CompilerParams(
            # Independent tiles -> shardable across TensorCores (v7x megacore).
            dimension_semantics=("parallel",),
            # Room for the double-buffered inputs + headroom; under v7x's
            # 64 MiB physical VMEM and well under v5e/v6e's 128 MiB.
            vmem_limit_bytes=56 * 1024 * 1024,
        ),
    )(prediction, target)

    # Tiny final reduction (grid_n x C elements) + mean over the true N.
    return jnp.sum(partials) / jnp.float32(n)


if __name__ == "__main__":
    key = jax.random.PRNGKey(0)
    k_logits, k_labels = jax.random.split(key)

    # Small synthetic shapes consistent with the module: batch=8, classes=32.
    N, C = 8, 32
    prediction = jax.random.normal(k_logits, (N, C), dtype=jnp.float32)
    # Integer class labels -> one-hot probabilities (mirrors the torch module's
    # `target.to(dtype=prediction.dtype)` soft-target path).
    labels = jax.random.randint(k_labels, (N,), 0, C)
    target = jax.nn.one_hot(labels, C, dtype=jnp.float32)

    loss = cross_entropy(prediction, target)
    jax.block_until_ready(loss)

    # Pure-JAX reference (same soft-target CE with mean reduction).
    log_probs = jax.nn.log_softmax(prediction, axis=-1)
    ref = -jnp.mean(jnp.sum(target * log_probs, axis=-1))
    assert jnp.allclose(loss, ref, rtol=1e-5, atol=1e-5), (loss, ref)

    # Second check: multi-tile grid with a non-divisible batch exercises the
    # tail-masking and parallel partial-sum path.
    N2, C2 = 300, 160
    k1, k2 = jax.random.split(jax.random.PRNGKey(1))
    pred2 = jax.random.normal(k1, (N2, C2), dtype=jnp.float32)
    tgt2 = jax.nn.softmax(jax.random.normal(k2, (N2, C2), dtype=jnp.float32), axis=-1)
    loss2 = cross_entropy(pred2, tgt2, tile_n=64)
    jax.block_until_ready(loss2)
    ref2 = -jnp.mean(jnp.sum(tgt2 * jax.nn.log_softmax(pred2, axis=-1), axis=-1))
    assert jnp.allclose(loss2, ref2, rtol=1e-5, atol=1e-5), (loss2, ref2)

    # Third check: mixed dtypes (bf16 targets cast to f32 prediction dtype),
    # auto tile selection with a batch that is a multiple of the tile.
    N3, C3 = 512, 128
    k3, k4 = jax.random.split(jax.random.PRNGKey(2))
    pred3 = jax.random.normal(k3, (N3, C3), dtype=jnp.float32)
    tgt3 = jax.nn.softmax(
        jax.random.normal(k4, (N3, C3), dtype=jnp.float32), axis=-1
    ).astype(jnp.bfloat16)
    loss3 = cross_entropy(pred3, tgt3)
    jax.block_until_ready(loss3)
    ref3 = -jnp.mean(
        jnp.sum(tgt3.astype(jnp.float32) * jax.nn.log_softmax(pred3, axis=-1), axis=-1)
    )
    assert jnp.allclose(loss3, ref3, rtol=1e-4, atol=1e-4), (loss3, ref3)

    print("KERNEL_OK")
</pallas_src>

<mosaic_0001>
module attributes {stable_mosaic.version = 11 : i64} {
  func.func @_ce_kernel(%arg0: i32, %arg1: memref<8x32xf32, #tpu.memory_space<vmem>>, %arg2: memref<8x32xf32, #tpu.memory_space<vmem>>, %arg3: memref<1x32xf32, #tpu.memory_space<vmem>>) attributes {dimension_semantics = [#tpu.dimension_semantics<parallel>], iteration_bounds = array<i64: 1>, scalar_prefetch = 0 : i64, scratch_operands = 0 : i64, tpu.core_type = #tpu.core_type<tc>, window_params = [{transform_indices = @transform_0, window_bounds = array<i64: 8, 32>}, {transform_indices = @transform_1, window_bounds = array<i64: 8, 32>}, {transform_indices = @transform_2, window_bounds = array<i64: 1, 32>}]} {
    %c0 = arith.constant 0 : index
    %c0_0 = arith.constant 0 : index
    %0 = vector.load %arg1[%c0, %c0_0] : memref<8x32xf32, #tpu.memory_space<vmem>>, vector<8x32xf32>
    %c0_1 = arith.constant 0 : index
    %c0_2 = arith.constant 0 : index
    %1 = vector.load %arg2[%c0_1, %c0_2] : memref<8x32xf32, #tpu.memory_space<vmem>>, vector<8x32xf32>
    %cst = arith.constant dense<0xFF800000> : vector<8xf32>
    %2 = vector.multi_reduction <maximumf>, %0, %cst [1] : vector<8x32xf32> to vector<8xf32>
    %3 = vector.shape_cast %2 : vector<8xf32> to vector<8x1xf32>
    %4 = vector.broadcast %3 : vector<8x1xf32> to vector<8x32xf32>
    %5 = arith.subf %0, %4 : vector<8x32xf32>
    %6 = math.exp %5 : vector<8x32xf32>
    %cst_3 = arith.constant dense<0.000000e+00> : vector<8xf32>
    %7 = vector.multi_reduction <add>, %6, %cst_3 [1] : vector<8x32xf32> to vector<8xf32>
    %8 = vector.shape_cast %7 : vector<8xf32> to vector<8x1xf32>
    %9 = math.log %8 : vector<8x1xf32>
    %10 = vector.broadcast %9 : vector<8x1xf32> to vector<8x32xf32>
    %11 = arith.subf %5, %10 : vector<8x32xf32>
    %12 = arith.mulf %1, %11 : vector<8x32xf32>
    %cst_4 = arith.constant dense<0.000000e+00> : vector<32xf32>
    %13 = vector.multi_reduction <add>, %12, %cst_4 [0] : vector<8x32xf32> to vector<32xf32>
    %14 = vector.shape_cast %13 : vector<32xf32> to vector<1x32xf32>
    %cst_5 = arith.constant 0.000000e+00 : f32
    %15 = vector.broadcast %cst_5 : f32 to vector<1x32xf32>
    %16 = arith.subf %15, %14 : vector<1x32xf32>
    %c0_6 = arith.constant 0 : index
    %c0_7 = arith.constant 0 : index
    %17 = vector.load %arg3[%c0_6, %c0_7] : memref<1x32xf32, #tpu.memory_space<vmem>>, vector<1x32xf32>
    tpu.vector_store %arg3[%c0_6, %c0_7], %16 {strides = array<i32>} : memref<1x32xf32, #tpu.memory_space<vmem>>, vector<1x32xf32>,
    return
  }
  func.func @transform_0(%arg0: i32) -> (i32, i32) {
    %c0_i32 = arith.constant 0 : i32
    %c0_i32_0 = arith.constant 0 : i32
    return %arg0, %c0_i32 : i32, i32
  }
  func.func @transform_1(%arg0: i32) -> (i32, i32) {
    %c0_i32 = arith.constant 0 : i32
    %c0_i32_0 = arith.constant 0 : i32
    return %arg0, %c0_i32 : i32, i32
  }
  func.func @transform_2(%arg0: i32) -> (i32, i32) {
    %c0_i32 = arith.constant 0 : i32
    %c0_i32_0 = arith.constant 0 : i32
    return %arg0, %c0_i32 : i32, i32
  }
}

</mosaic_0001>

<llo_original>
// kernel: tpu_custom_call.1
$region0: #{tpu_custom_call.1}
  #allocation0 [shape = 'u32[]', space=smem, size = 0x4, offset = 0x4, fixed_abs, tag = 'smem constant byte address 0x4 - core index']
  #allocation1 [shape = 'u32[144,128]{1,0:T(1,128)}', space=vmem, size = 0x12000, scoped, tag = 'internal scratch']
  %s0 = inlined_call_operand.hbm [shape: f32[8,32], index: 0, kind: input, shape index: {}]
  %s1 = inlined_call_operand.hbm [shape: f32[8,32], index: 1, kind: input, shape index: {}]
  %s2 = inlined_call_operand.hbm [shape: f32[1,32], index: 2, kind: output, shape index: {}]
  %s3 = sld [smem:[#allocation0]]
  $region26: #{tpu_custom_call.1} parent=0
    _
  %s5 = ssub.s32 1, %s3
  %s6 = scalar_select 0, %s5, %s3
  $region1: #{tpu_custom_call.1} parent=0
    #allocation2 [shape = 'u8[4096]{0}', space=vmem, size = 0x1000, scoped, tag = 'input window, operand 0, single buffered']
    #allocation3 [shape = 's32[1]{0}', space=sflag, size = 0x4, scoped, tag = 'scoped memory for tpu_custom_call.1']
    #allocation4 [shape = 's32[1]{0}', space=sflag, size = 0x4, scoped, tag = 'scoped memory for tpu_custom_call.1']
    #allocation5 [shape = 'u8[4096]{0}', space=vmem, size = 0x1000, scoped, tag = 'input window, operand 1, single buffered']
    #allocation6 [shape = 's32[1]{0}', space=sflag, size = 0x4, scoped, tag = 'scoped memory for tpu_custom_call.1']
    #allocation7 [shape = 'u8[512]{0}', space=vmem, size = 0x400, scoped, tag = 'output window, operand 0, single buffered']
    %7 = vsyncpa [#allocation3], 0
    %8 = vsyncpa [#allocation6], 0
    %9 = vsyncpa [#allocation4], 0
    // Predicated region
    $region2: #{tpu_custom_call.1} parent=1 // pred_check
      _
    $region3: #{tpu_custom_call.1} parent=1 // pred_check_branch
      %11 = sbr.rel (0) target = $region5
    $region4: #{tpu_custom_call.1} parent=1 // pred_region
      %s13 = ssub.s32 128, 128
      %14 = vsyncadd [#allocation3], %s13
      %s16 = sshll.u32 [#allocation2], 4
      %s17 = int_to_ptr.vmem [resolvable:$true] %s16
      %19 = dma.hbm_to_vmem [thread:$0]  %s0, 128, %s17, [#allocation3]
    $region5: #{tpu_custom_call.1} parent=1 // pred_fallthru
      _
    // Predicated region
    $region6: #{tpu_custom_call.1} parent=1 // pred_check
      _
    $region7: #{tpu_custom_call.1} parent=1 // pred_check_branch
      %21 = sbr.rel (0) target = $region9
    $region8: #{tpu_custom_call.1} parent=1 // pred_region
      %s23 = ssub.s32 128, 128
      %24 = vsyncadd [#allocation6], %s23
      %s26 = sshll.u32 [#allocation5], 4
      %s27 = int_to_ptr.vmem [resolvable:$true] %s26
      %29 = dma.hbm_to_vmem [thread:$0]  %s1, 128, %s27, [#allocation6]
    $region9: #{tpu_custom_call.1} parent=1 // pred_fallthru
      _
    // Predicated region
    $region10: #{tpu_custom_call.1} parent=1 // pred_check
      _
    $region11: #{tpu_custom_call.1} parent=1 // pred_check_branch
      %31 = sbr.rel (0) target = $region13
    $region12: #{tpu_custom_call.1} parent=1 // pred_region
      %32 = dma.done [#allocation3], 128
    $region13: #{tpu_custom_call.1} parent=1 // pred_fallthru
      _
    // Predicated region
    $region14: #{tpu_custom_call.1} parent=1 // pred_check
      _
    $region15: #{tpu_custom_call.1} parent=1 // pred_check_branch
      %34 = sbr.rel (0) target = $region17
    $region16: #{tpu_custom_call.1} parent=1 // pred_region
      %35 = dma.done [#allocation6], 128
    $region17: #{tpu_custom_call.1} parent=1 // pred_fallthru
      _
    %v36 = vld [vmem:[#allocation2] sm:$0xff]
    %v37 = vld [vmem:[#allocation5] sm:$0xff]
    %vm38 = vcmask 261120
    %v39 = vsel %vm38, %v36, -inf
    %40 = vmax.xlane.f32.xlu0 %v39
    %v41 = vpop.xlane.xlu0 %40
    %v42 = vsub.f32 %v36, %v41
    %v43 = vmul.f32 %v42, 1.442695
    %v44 = vpow.pop %v43
    %v45 = vsel %vm38, %v44, 0.0
    %46 = vadd.xlane.f32.xlu0 %v45
    %v47 = vpop.xlane.xlu0 %46
    %v48 = vlog2.pop %v47
    %v49 = vmul.f32 %v48, 0.6931472
    %v50 = vsub.f32 %v42, %v49
    %v51 = vmul.f32 %v37, %v50
    %v52 = vsel %vm38, %v51, 0.0
    %v53 = vrot.slane %v52, 4
    %v54 = vadd.f32 %v52, %v53
    %v55 = vrot.slane %v54, 2
    %v56 = vadd.f32 %v54, %v55
    %v57 = vrot.slane %v56, 1
    %v58 = vadd.f32 %v56, %v57
    %v59 = vsub.f32 0.0, %v58
    %vm60 = vcmask 253952
    %61 = vst.msk [vmem:[#allocation7] sm:$0x1] %vm60, %v59
    // Predicated region
    $region18: #{tpu_custom_call.1} parent=1 // pred_check
      _
    $region19: #{tpu_custom_call.1} parent=1 // pred_check_branch
      %63 = sbr.rel (0) target = $region21
    $region20: #{tpu_custom_call.1} parent=1 // pred_region
      %s65 = ssub.s32 16, 16
      %66 = vsyncadd [#allocation4], %s65
      %s68 = sshll.u32 [#allocation7], 4
      %s69 = int_to_ptr.vmem [resolvable:$true] %s68
      %71 = dma.vmem_to_hbm [thread:$0]  %s69, 16, %s2, [#allocation4]
    $region21: #{tpu_custom_call.1} parent=1 // pred_fallthru
      _
    // Predicated region
    $region22: #{tpu_custom_call.1} parent=1 // pred_check
      _
    $region23: #{tpu_custom_call.1} parent=1 // pred_check_branch
      %73 = sbr.rel (0) target = $region25
    $region24: #{tpu_custom_call.1} parent=1 // pred_region
      %74 = dma.done [#allocation4], 16
    $region25: #{tpu_custom_call.1} parent=1 // pred_fallthru
      _
    %75 = vsyncpa [#allocation3], 1
    %76 = vsyncpa [#allocation6], 1
    %77 = vsyncpa [#allocation4], 1

</llo_original>
